<compile_context>
chip_gen: v6e
topology: v6e:2x2x1
jax: 0.10.0
libtpu: 0.0.40
codegen_flags: <defaults>
</compile_context>

<pallas_src>
import functools

import jax
import jax.numpy as jnp
from jax.experimental import pallas as pl
from jax.experimental.pallas import tpu as pltpu


def _round_up(n, m):
    return ((n + m - 1) // m) * m


def _inst_seg_kernel(x_ref, w1_ref, b1_ref, q_ref, mask_ref):
    # x_ref:    (C, T_HW)   bf16  current (batch, spatial-tile) block
    # w1_ref:   (D, C)      bf16  1x1-conv / linear backbone weight (resident)
    # b1_ref:   (D, 1)      f32   backbone bias (resident)
    # q_ref:    (Qp, D)     bf16  learned instance queries, padded (resident)
    # mask_ref: (Qp, T_HW)  bf16  per-query mask logits for this tile
    feat = jnp.maximum(
        jnp.dot(w1_ref[...], x_ref[...], preferred_element_type=jnp.float32)
        + b1_ref[...],
        0.0,
    )
    mask_ref[...] = jnp.dot(
        q_ref[...], feat.astype(jnp.bfloat16),
        preferred_element_type=jnp.float32,
    ).astype(mask_ref.dtype)


@functools.partial(jax.jit, static_argnames=("t_hw",))
def instance_segmentation_forward(x, w1, b1, queries, w_cls, *, t_hw=4096):
    """x: [B, C, H, W] f32 -> (mask_logits [B, Q, H, W] bf16, cls_logits [B, Q, NC] f32)."""
    B, C, H, W = x.shape
    HW = H * W
    D = w1.shape[0]
    Q = queries.shape[0]
    NC = w_cls.shape[1]

    # ---- batch-invariant classification head: hoisted out of the kernel ----
    cls_logits = jnp.broadcast_to(
        jnp.dot(queries, w_cls, preferred_element_type=jnp.float32)[None],
        (B, Q, NC),
    )

    # ---- pad Q to a bf16 sublane multiple; pick / pad the spatial tile ----
    q_pad = (-Q) % 16
    queries_p = jnp.pad(queries, ((0, q_pad), (0, 0))) if q_pad else queries
    Qp = Q + q_pad

    t_hw = min(t_hw, _round_up(HW, 128))
    t_hw = _round_up(t_hw, 128)                     # lane-dense tile
    hw_pad = (-HW) % t_hw
    HWp = HW + hw_pad

    x_flat = x.reshape(B, C, HW)
    if hw_pad:
        x_flat = jnp.pad(x_flat, ((0, 0), (0, 0), (0, hw_pad)))

    # bf16 MXU operands; accumulation stays f32 inside the kernel.
    x_bf = x_flat.astype(jnp.bfloat16)
    w1_bf = w1.astype(jnp.bfloat16)
    q_bf = queries_p.astype(jnp.bfloat16)
    b1_col = b1.reshape(D, 1).astype(jnp.float32)

    grid = (B, HWp // t_hw)

    mask_flat = pl.pallas_call(
        _inst_seg_kernel,
        out_shape=jax.ShapeDtypeStruct((B, Qp, HWp), jnp.bfloat16),
        grid=grid,
        in_specs=[
            pl.BlockSpec((pl.Squeezed(), C, t_hw), lambda b, s: (b, 0, s)),
            pl.BlockSpec((D, C), lambda b, s: (0, 0)),
            pl.BlockSpec((D, 1), lambda b, s: (0, 0)),
            pl.BlockSpec((Qp, D), lambda b, s: (0, 0)),
        ],
        out_specs=pl.BlockSpec((pl.Squeezed(), Qp, t_hw), lambda b, s: (b, 0, s)),
        compiler_params=pltpu.CompilerParams(
            dimension_semantics=("parallel", "parallel"),
            vmem_limit_bytes=48 * 1024 * 1024,
        ),
    )(x_bf, w1_bf, b1_col, q_bf)

    mask_logits = mask_flat[:, :Q, :HW].reshape(B, Q, H, W)
    return mask_logits, cls_logits


def _reference(x, w1, b1, queries, w_cls):
    """Pure-JAX reference matching the kernel's bf16 quantization points."""
    B, C, H, W = x.shape
    xf = x.reshape(B, C, H * W).astype(jnp.bfloat16).astype(jnp.float32)
    w1b = w1.astype(jnp.bfloat16).astype(jnp.float32)
    qb = queries.astype(jnp.bfloat16).astype(jnp.float32)
    feat = jnp.maximum(jnp.einsum('dc,bcn->bdn', w1b, xf) + b1[None, :, None], 0.0)
    feat = feat.astype(jnp.bfloat16).astype(jnp.float32)
    mask = jnp.einsum('qd,bdn->bqn', qb, feat).astype(jnp.bfloat16)
    mask = mask.reshape(B, -1, H, W)
    cls = jnp.dot(queries, w_cls, preferred_element_type=jnp.float32)
    cls = jnp.broadcast_to(cls[None], (B,) + cls.shape)
    return mask, cls


if __name__ == "__main__":
    key = jax.random.PRNGKey(0)
    kx, k1, k2, k3, k4 = jax.random.split(key, 5)

    B, C, H, W = 2, 4, 16, 16       # input feature map (NCHW)
    D = 32                          # hidden feature dim
    NQ = 8                          # number of instance queries
    NC = 6                          # num_classes + 1 (no-object)

    x = jax.random.normal(kx, (B, C, H, W), dtype=jnp.float32)
    w1 = jax.random.normal(k1, (D, C), dtype=jnp.float32) * 0.1
    b1 = jax.random.normal(k2, (D,), dtype=jnp.float32) * 0.1
    queries = jax.random.normal(k3, (NQ, D), dtype=jnp.float32) * 0.1
    w_cls = jax.random.normal(k4, (D, NC), dtype=jnp.float32) * 0.1

    # t_hw=128 so the tiny test exercises a multi-step (B, HW-tile) grid.
    mask_logits, cls_logits = instance_segmentation_forward(
        x, w1, b1, queries, w_cls, t_hw=128)
    jax.block_until_ready(mask_logits)
    jax.block_until_ready(cls_logits)

    ref_mask, ref_cls = _reference(x, w1, b1, queries, w_cls)

    assert mask_logits.shape == (B, NQ, H, W)
    assert cls_logits.shape == (B, NQ, NC)
    assert jnp.allclose(mask_logits.astype(jnp.float32),
                        ref_mask.astype(jnp.float32), atol=2e-2, rtol=2e-2)
    assert jnp.allclose(cls_logits, ref_cls, atol=1e-4, rtol=1e-4)

    print("KERNEL_OK")
</pallas_src>

<mosaic_0001>
module attributes {stable_mosaic.version = 11 : i64} {
  func.func @_inst_seg_kernel(%arg0: i32, %arg1: i32, %arg2: memref<1x4x128xbf16, #tpu.memory_space<vmem>>, %arg3: memref<32x4xbf16, #tpu.memory_space<vmem>>, %arg4: memref<32x1xf32, #tpu.memory_space<vmem>>, %arg5: memref<16x32xbf16, #tpu.memory_space<vmem>>, %arg6: memref<1x16x128xbf16, #tpu.memory_space<vmem>>) attributes {dimension_semantics = [#tpu.dimension_semantics<parallel>, #tpu.dimension_semantics<parallel>], iteration_bounds = array<i64: 2, 2>, scalar_prefetch = 0 : i64, scratch_operands = 0 : i64, tpu.core_type = #tpu.core_type<tc>, window_params = [{transform_indices = @transform_0, window_bounds = array<i64: 1, 4, 128>}, {pipeline_mode = #tpu.pipeline_mode<synchronous>, transform_indices = @transform_1, window_bounds = array<i64: 32, 4>}, {pipeline_mode = #tpu.pipeline_mode<synchronous>, transform_indices = @transform_2, window_bounds = array<i64: 32, 1>}, {pipeline_mode = #tpu.pipeline_mode<synchronous>, transform_indices = @transform_3, window_bounds = array<i64: 16, 32>}, {transform_indices = @transform_4, window_bounds = array<i64: 1, 16, 128>}]} {
    %c0 = arith.constant 0 : index
    %c0_0 = arith.constant 0 : index
    %0 = vector.load %arg3[%c0, %c0_0] : memref<32x4xbf16, #tpu.memory_space<vmem>>, vector<32x4xbf16>
    %c0_1 = arith.constant 0 : index
    %c0_2 = arith.constant 0 : index
    %c0_3 = arith.constant 0 : index
    %1 = vector.load %arg2[%c0_1, %c0_2, %c0_3] : memref<1x4x128xbf16, #tpu.memory_space<vmem>>, vector<1x4x128xbf16>
    %2 = vector.shape_cast %1 : vector<1x4x128xbf16> to vector<4x128xbf16>
    %cst = arith.constant dense<0.000000e+00> : vector<32x128xf32>
    %3 = tpu.matmul %0, %2, %cst {dimension_numbers = #tpu.dot_dimension_numbers<[1], [0], [0], [1], [0, 0, 1, 1], [], []>} : vector<32x4xbf16>, vector<4x128xbf16>, vector<32x128xf32> -> vector<32x128xf32>
    %c0_4 = arith.constant 0 : index
    %c0_5 = arith.constant 0 : index
    %4 = vector.load %arg4[%c0_4, %c0_5] : memref<32x1xf32, #tpu.memory_space<vmem>>, vector<32x1xf32>
    %5 = vector.broadcast %4 : vector<32x1xf32> to vector<32x128xf32>
    %6 = arith.addf %3, %5 : vector<32x128xf32>
    %cst_6 = arith.constant 0.000000e+00 : f32
    %7 = vector.broadcast %cst_6 : f32 to vector<32x128xf32>
    %8 = arith.maximumf %6, %7 : vector<32x128xf32>
    %c0_7 = arith.constant 0 : index
    %c0_8 = arith.constant 0 : index
    %9 = vector.load %arg5[%c0_7, %c0_8] : memref<16x32xbf16, #tpu.memory_space<vmem>>, vector<16x32xbf16>
    %10 = arith.truncf %8 : vector<32x128xf32> to vector<32x128xbf16>
    %cst_9 = arith.constant dense<0.000000e+00> : vector<16x128xf32>
    %11 = tpu.matmul %9, %10, %cst_9 {dimension_numbers = #tpu.dot_dimension_numbers<[1], [0], [0], [1], [0, 0, 1, 1], [], []>} : vector<16x32xbf16>, vector<32x128xbf16>, vector<16x128xf32> -> vector<16x128xf32>
    %12 = arith.truncf %11 : vector<16x128xf32> to vector<16x128xbf16>
    %c0_10 = arith.constant 0 : index
    %c0_11 = arith.constant 0 : index
    %c0_12 = arith.constant 0 : index
    %13 = vector.load %arg6[%c0_10, %c0_11, %c0_12] : memref<1x16x128xbf16, #tpu.memory_space<vmem>>, vector<1x16x128xbf16>
    %14 = vector.shape_cast %13 : vector<1x16x128xbf16> to vector<16x128xbf16>
    %15 = vector.shape_cast %12 : vector<16x128xbf16> to vector<1x16x128xbf16>
    tpu.vector_store %arg6[%c0_10, %c0_11, %c0_12], %15 {strides = array<i32>} : memref<1x16x128xbf16, #tpu.memory_space<vmem>>, vector<1x16x128xbf16>,
    return
  }
  func.func @transform_0(%arg0: i32, %arg1: i32) -> (i32, i32, i32) {
    %c0_i32 = arith.constant 0 : i32
    %c0_i32_0 = arith.constant 0 : i32
    return %arg0, %c0_i32, %arg1 : i32, i32, i32
  }
  func.func @transform_1(%arg0: i32, %arg1: i32) -> (i32, i32) {
    %c0_i32 = arith.constant 0 : i32
    %c0_i32_0 = arith.constant 0 : i32
    %c0_i32_1 = arith.constant 0 : i32
    return %c0_i32, %c0_i32_0 : i32, i32
  }
  func.func @transform_2(%arg0: i32, %arg1: i32) -> (i32, i32) {
    %c0_i32 = arith.constant 0 : i32
    %c0_i32_0 = arith.constant 0 : i32
    %c0_i32_1 = arith.constant 0 : i32
    return %c0_i32, %c0_i32_0 : i32, i32
  }
  func.func @transform_3(%arg0: i32, %arg1: i32) -> (i32, i32) {
    %c0_i32 = arith.constant 0 : i32
    %c0_i32_0 = arith.constant 0 : i32
    %c0_i32_1 = arith.constant 0 : i32
    return %c0_i32, %c0_i32_0 : i32, i32
  }
  func.func @transform_4(%arg0: i32, %arg1: i32) -> (i32, i32, i32) {
    %c0_i32 = arith.constant 0 : i32
    %c0_i32_0 = arith.constant 0 : i32
    return %arg0, %c0_i32, %arg1 : i32, i32, i32
  }
}

</mosaic_0001>

<llo_original>
// kernel: instance_segmentation_forward.1
$region0: #{instance_segmentation_forward.1}
  #allocation0 [shape = 'u32[]', space=smem, size = 0x4, offset = 0x4, fixed_abs, tag = 'smem constant byte address 0x4 - core index']
  #allocation1 [shape = 'u32[144,128]{1,0:T(1,128)}', space=vmem, size = 0x12000, scoped, tag = 'internal scratch']
  %s0 = inlined_call_operand.vmem [shape: bf16[2,4,256], index: 0, kind: input, shape index: {}]
  %s1 = inlined_call_operand.vmem [shape: bf16[32,4], index: 1, kind: input, shape index: {}]
  %s2 = inlined_call_operand.vmem [shape: f32[32,1], index: 2, kind: input, shape index: {}]
  %s3 = inlined_call_operand.vmem [shape: bf16[16,32], index: 3, kind: input, shape index: {}]
  %s4 = inlined_call_operand.vmem [shape: bf16[2,16,256], index: 4, kind: output, shape index: {}]
  %s5 = sld [smem:[#allocation0]]
  $region86: #{instance_segmentation_forward.1} parent=0
    _
  %s7 = ssub.s32 1, %s5
  %s8 = scalar_select 0, %s7, %s5
  $region1: #{instance_segmentation_forward.1} parent=0
    #allocation2 [shape = 'u8[8192]{0}', space=vmem, size = 0x2000, scoped, tag = 'output window, operand 0']
    loop: start=0, step=1, limit=6
    $region2: #{instance_segmentation_forward.1} parent=1 // loop_pre_header
      _
    $region3: #{instance_segmentation_forward.1} parent=1 // loop_header
      %s10 = sphi 0, %s14
      %p11 = scmp.ge.s32.totalorder %s10, 6
      %s17 = sphi 0, %s29
      %s18 = sphi 0, %s25
      %s19 = sphi 0, %s17
      %s20 = sphi 0, %s18
      %s21 = sphi 0, %s19
      %s22 = sphi 0, %s20
      %s34 = sphi 0, %s36
      %s37 = sphi 0, %s34
      %s38 = sphi 0, %s37
      %s54 = sphi 0, %s38
      %s58 = sphi 0, %s58
      %s60 = sphi 0, %s58
      %s61 = sphi 0, %s60
      %s75 = sphi 0, %s61
      %s79 = sphi 0, %s79
      %s81 = sphi 0, %s79
      %s82 = sphi 0, %s81
      %s96 = sphi 0, %s82
      %s100 = sphi 0, %s100
      %s102 = sphi 0, %s100
      %s103 = sphi 0, %s102
      %s117 = sphi 0, %s103
      %s125 = sphi 0, %s127
      %s128 = sphi 0, %s125
      %s129 = sphi 0, %s128
      %s145 = sphi 0, %s129
    $region4: #{instance_segmentation_forward.1} parent=1 // loop_header_branch
      %13 = sbr.rel (%p11) target = $region8
    $region5: #{instance_segmentation_forward.1} parent=1 // loop_body
      %s15 = ssub.s32 %s10, 1
      %s16 = ssub.s32 %s10, 2
      %s23 = sadd.s32 1, %s18
      %p24 = scmp.ge.s32.totalorder %s23, 2
      %s25 = scalar_select %p24, 0, %s23
      %s26 = sadd.s32 1, %s17
      %s27 = scalar_select %p24, %s26, %s17
      %p28 = scmp.ge.s32.totalorder %s27, 2
      %s29 = scalar_select %p28, 0, %s27
      %s30 = ssub.s32 %s17, %s29
      %s31 = ssub.s32 %s18, %s25
      %s32 = sor.u32 %s30, %s31
      %p33 = scmp.eq.s32.totalorder %s32, 0
      %s35 = sadd.s32 %s34, 1
      %s36 = scalar_select %p33, %s34, %s35
      %p39 = pneg %p33
      %p40 = scmp.eq.s32.totalorder %s10, 3
      %p41 = por %p39, %p40
      %p42 = scmp.ne.s32.totalorder %s34, %s37
      %p43 = scmp.eq.s32.totalorder %s10, 0
      %p44 = por %p42, %p43
      %p45 = scmp.ne.s32.totalorder %s34, %s37
      %p46 = scmp.eq.s32.totalorder %s15, 3
      %p47 = por %p45, %p46
      %p48 = scmp.ne.s32.totalorder %s37, %s38
      %p49 = scmp.eq.s32.totalorder %s15, 0
      %p50 = por %p48, %p49
      %p51 = scmp.ne.s32.totalorder %s37, %s38
      %p52 = scmp.eq.s32.totalorder %s16, 3
      %p53 = por %p51, %p52
      %p55 = scmp.ne.s32.totalorder %s38, %s54
      %p56 = scmp.eq.s32.totalorder %s16, 0
      %p57 = por %p55, %p56
      %s59 = sadd.s32 %s58, 1
      %p62 = scmp.eq.s32.totalorder %s10, 3
      %p63 = scmp.ne.s32.totalorder %s58, %s60
      %p64 = scmp.eq.s32.totalorder %s10, 0
      %p65 = por %p63, %p64
      %p66 = scmp.ne.s32.totalorder %s58, %s60
      %p67 = scmp.eq.s32.totalorder %s15, 3
      %p68 = por %p66, %p67
      %p69 = scmp.ne.s32.totalorder %s60, %s61
      %p70 = scmp.eq.s32.totalorder %s15, 0
      %p71 = por %p69, %p70
      %p72 = scmp.ne.s32.totalorder %s60, %s61
      %p73 = scmp.eq.s32.totalorder %s16, 3
      %p74 = por %p72, %p73
      %p76 = scmp.ne.s32.totalorder %s61, %s75
      %p77 = scmp.eq.s32.totalorder %s16, 0
      %p78 = por %p76, %p77
      %s80 = sadd.s32 %s79, 1
      %p83 = scmp.eq.s32.totalorder %s10, 3
      %p84 = scmp.ne.s32.totalorder %s79, %s81
      %p85 = scmp.eq.s32.totalorder %s10, 0
      %p86 = por %p84, %p85
      %p87 = scmp.ne.s32.totalorder %s79, %s81
      %p88 = scmp.eq.s32.totalorder %s15, 3
      %p89 = por %p87, %p88
      %p90 = scmp.ne.s32.totalorder %s81, %s82
      %p91 = scmp.eq.s32.totalorder %s15, 0
      %p92 = por %p90, %p91
      %p93 = scmp.ne.s32.totalorder %s81, %s82
      %p94 = scmp.eq.s32.totalorder %s16, 3
      %p95 = por %p93, %p94
      %p97 = scmp.ne.s32.totalorder %s82, %s96
      %p98 = scmp.eq.s32.totalorder %s16, 0
      %p99 = por %p97, %p98
      %s101 = sadd.s32 %s100, 1
      %p104 = scmp.eq.s32.totalorder %s10, 3
      %p105 = scmp.ne.s32.totalorder %s100, %s102
      %p106 = scmp.eq.s32.totalorder %s10, 0
      %p107 = por %p105, %p106
      %p108 = scmp.ne.s32.totalorder %s100, %s102
      %p109 = scmp.eq.s32.totalorder %s15, 3
      %p110 = por %p108, %p109
      %p111 = scmp.ne.s32.totalorder %s102, %s103
      %p112 = scmp.eq.s32.totalorder %s15, 0
      %p113 = por %p111, %p112
      %p114 = scmp.ne.s32.totalorder %s102, %s103
      %p115 = scmp.eq.s32.totalorder %s16, 3
      %p116 = por %p114, %p115
      %p118 = scmp.ne.s32.totalorder %s103, %s117
      %p119 = scmp.eq.s32.totalorder %s16, 0
      %p120 = por %p118, %p119
      %s121 = ssub.s32 %s17, %s29
      %s122 = ssub.s32 %s18, %s25
      %s123 = sor.u32 %s121, %s122
      %p124 = scmp.eq.s32.totalorder %s123, 0
      %s126 = sadd.s32 %s125, 1
      %s127 = scalar_select %p124, %s125, %s126
      %p130 = pneg %p124
      %p131 = scmp.eq.s32.totalorder %s10, 3
      %p132 = por %p130, %p131
      %p133 = scmp.ne.s32.totalorder %s125, %s128
      %p134 = scmp.eq.s32.totalorder %s10, 0
      %p135 = por %p133, %p134
      %p136 = scmp.ne.s32.totalorder %s125, %s128
      %p137 = scmp.eq.s32.totalorder %s15, 3
      %p138 = por %p136, %p137
      %p139 = scmp.ne.s32.totalorder %s128, %s129
      %p140 = scmp.eq.s32.totalorder %s15, 0
      %p141 = por %p139, %p140
      %p142 = scmp.ne.s32.totalorder %s128, %s129
      %p143 = scmp.eq.s32.totalorder %s16, 3
      %p144 = por %p142, %p143
      %p146 = scmp.ne.s32.totalorder %s129, %s145
      %p147 = scmp.eq.s32.totalorder %s16, 0
      %p148 = por %p146, %p147
      %p149 = scmp.le.s32.totalorder 1, %s10
      %p150 = scmp.lt.s32.totalorder %s10, 5
      %p151 = pnand %p149, %p150
      %p152 = pneg %p151
      // Predicated region
      $region9: #{instance_segmentation_forward.1} parent=5 // pred_check
        _
      $region10: #{instance_segmentation_forward.1} parent=5 // pred_check_branch
        %154 = sbr.rel (%p151) target = $region12
      $region11: #{instance_segmentation_forward.1} parent=5 // pred_region
        %s155 = ssub.s32 %s10, 1
        // Predicated region
        $region13: #{instance_segmentation_forward.1} parent=11 // pred_check
          %p156 = pneg %p71
        $region14: #{instance_segmentation_forward.1} parent=11 // pred_check_branch
          %158 = sbr.rel (%p156) target = $region16
        $region15: #{instance_segmentation_forward.1} parent=11 // pred_region
          _
        $region16: #{instance_segmentation_forward.1} parent=11 // pred_fallthru
          _
        // Predicated region
        $region17: #{instance_segmentation_forward.1} parent=11 // pred_check
          %p159 = pneg %p92
        $region18: #{instance_segmentation_forward.1} parent=11 // pred_check_branch
          %161 = sbr.rel (%p159) target = $region20
        $region19: #{instance_segmentation_forward.1} parent=11 // pred_region
          _
        $region20: #{instance_segmentation_forward.1} parent=11 // pred_fallthru
          _
        // Predicated region
        $region21: #{instance_segmentation_forward.1} parent=11 // pred_check
          %p162 = pneg %p113
        $region22: #{instance_segmentation_forward.1} parent=11 // pred_check_branch
          %164 = sbr.rel (%p162) target = $region24
        $region23: #{instance_segmentation_forward.1} parent=11 // pred_region
          _
        $region24: #{instance_segmentation_forward.1} parent=11 // pred_fallthru
          _
      $region12: #{instance_segmentation_forward.1} parent=5 // pred_fallthru
        _
      %p165 = scmp.lt.s32.totalorder %s10, 4
      // Predicated region
      $region25: #{instance_segmentation_forward.1} parent=5 // pred_check
        %p166 = pneg %p165
      $region26: #{instance_segmentation_forward.1} parent=5 // pred_check_branch
        %168 = sbr.rel (%p166) target = $region28
      $region27: #{instance_segmentation_forward.1} parent=5 // pred_region
        // Predicated region
        $region29: #{instance_segmentation_forward.1} parent=27 // pred_check
          %p169 = pneg %p44
        $region30: #{instance_segmentation_forward.1} parent=27 // pred_check_branch
          %171 = sbr.rel (%p169) target = $region32
        $region31: #{instance_segmentation_forward.1} parent=27 // pred_region
          %p172 = scmp.lt.s32.totalorder %s17, 1
          %s173 = scalar_select %p172, %s17, 1
          %p174 = scmp.lt.s32.totalorder %s18, 1
          %s175 = scalar_select %p174, %s18, 1
          %s176 = smul.addr %s173, 2
          %s177 = sadd.s32 %s175, %s176
          %s178 = smul.addr %s177, 2
          %s179 = scalar_lea.vmem %s0, %s178
        $region32: #{instance_segmentation_forward.1} parent=27 // pred_fallthru
          _
      $region28: #{instance_segmentation_forward.1} parent=5 // pred_fallthru
        _
      %p180 = scmp.le.s32.totalorder 1, %s10
      %p181 = scmp.lt.s32.totalorder %s10, 5
      %p182 = pnand %p180, %p181
      %p183 = pneg %p182
      // Predicated region
      $region33: #{instance_segmentation_forward.1} parent=5 // pred_check
        _
      $region34: #{instance_segmentation_forward.1} parent=5 // pred_check_branch
        %185 = sbr.rel (%p182) target = $region36
      $region35: #{instance_segmentation_forward.1} parent=5 // pred_region
        %s186 = ssub.s32 %s10, 1
        %p187 = scmp.lt.s32.totalorder %s19, 1
        %s188 = scalar_select %p187, %s19, 1
        %p189 = scmp.lt.s32.totalorder %s20, 1
        %s190 = scalar_select %p189, %s20, 1
        %s191 = smul.addr %s188, 2
        %s192 = sadd.s32 %s190, %s191
        %s193 = smul.addr %s192, 2
        %s194 = scalar_lea.vmem %s0, %s193
        %p195 = pneg %p50
        %p196 = pneg %p47
        %p197 = pneg %p71
        %p198 = pneg %p68
        %p199 = pneg %p92
        %p200 = pneg %p89
        %p201 = pneg %p113
        %p202 = pneg %p110
        %p203 = pneg %p141
        %p204 = pneg %p138
        %s205 = sand.u32 %s128, 1
        %s206 = sand.u32 %s128, 1
        %s207 = smul.addr %s206, 8
        %s208 = scalar_lea.vmem [#allocation2], %s207
        %p209 = scmp.lt.s32.totalorder %s19, 1
        %s210 = scalar_select %p209, %s19, 1
        %p211 = scmp.lt.s32.totalorder %s20, 1
        %s212 = scalar_select %p211, %s20, 1
        %s213 = smul.addr %s210, 2
        %s214 = sadd.s32 %s212, %s213
        %s215 = smul.addr %s214, 2
        %s216 = scalar_lea.vmem %s0, %s215
        %v218 = vld [vmem:[%s1] sm:$0xf]
        %v219 = vld [vmem:[%s1 + $0x4] sm:$0xf]
        %v220 = vld [vmem:[%s1 + $0x8] sm:$0xf]
        %v221 = vld [vmem:[%s1 + $0xc] sm:$0xf]
        %v222 = vld [vmem:[%s216] sm:$0x3]
        %v223 = vld [vmem:[%s2] sm:$0xff]
        %v224 = vld [vmem:[%s2 + $0x8] sm:$0xff]
        %v225 = vld [vmem:[%s2 + $0x10] sm:$0xff]
        %v226 = vld [vmem:[%s2 + $0x18] sm:$0xff]
        %228 = vset.pattern.permute.xlu0 0
        %229 = vperm.xlu0 %228, %v223
        %v230 = vpop.permute.xlu0 %229
        %233 = vset.pattern.permute.xlu0 0
        %234 = vperm.xlu0 %233, %v224
        %v235 = vpop.permute.xlu0 %234
        %238 = vset.pattern.permute.xlu0 0
        %239 = vperm.xlu0 %238, %v225
        %v240 = vpop.permute.xlu0 %239
        %243 = vset.pattern.permute.xlu0 0
        %244 = vperm.xlu0 %243, %v226
        %v245 = vpop.permute.xlu0 %244
        %v251 = vunpack.c.l.b16 %v218
        %v252 = vunpack.c.l.b16 %v219
        %v253 = vunpack.c.l.b16 %v220
        %v254 = vunpack.c.l.b16 %v221
        %v255 = vpack.c.b16 %v252, %v251
        %v256 = vpack.c.b16 %v254, %v253
        %vm257 = vcmask 31744
        %v259 = vsel %vm257, %v255, 0
        %v262 = vsel %vm257, %v256, 0
        %vm264 = vcmask 1041408
        %v266 = vsel %vm264, %v222, 0
        %268 = vmatprep.subr.bf16.mxu0 0
        %269 = vmatpush1.bf16.msra.mxu0 0
        %270 = vmatprep.subr.bf16.mxu0 0
        %271 = vmatpush1.bf16.msra.mxu0 0
        %272 = vmatprep.subr.bf16.mxu0 0
        %273 = vmatpush1.bf16.msra.mxu0 0
        %274 = vmatprep.subr.bf16.mxu0 0
        %275 = vmatpush1.bf16.msra.mxu0 0
        %276 = vmatprep.subr.bf16.mxu0 0
        %277 = vmatpush1.bf16.msra.mxu0 0
        %278 = vmatprep.subr.bf16.mxu0 0
        %279 = vmatpush1.bf16.msra.mxu0 0
        %280 = vmatprep.subr.bf16.mxu0 0
        %281 = vmatpush1.bf16.msra.mxu0 0
        %282 = vmatprep.subr.bf16.mxu0 0
        %283 = vmatpush1.bf16.msra.mxu0 %v266
        %284 = vmatprep.subr.bf16.mxu0 0
        %285 = vmatpush2.bf16.msra.mxu0 0
        %286 = vmatprep.subr.bf16.mxu0 0
        %287 = vmatpush2.bf16.msra.mxu0 0
        %288 = vmatprep.subr.bf16.mxu0 0
        %289 = vmatpush2.bf16.msra.mxu0 0
        %290 = vmatprep.subr.bf16.mxu0 0
        %291 = vmatpush2.bf16.msra.mxu0 0
        %292 = vmatprep.subr.bf16.mxu0 0
        %293 = vmatpush2.bf16.msra.mxu0 0
        %294 = vmatprep.subr.bf16.mxu0 0
        %295 = vmatpush2.bf16.msra.mxu0 0
        %296 = vmatprep.subr.bf16.mxu0 0
        %297 = vmatpush2.bf16.msra.mxu0 0
        %298 = vmatprep.subr.bf16.mxu0 0
        %299 = vmatpush2.bf16.msra.mxu0 0
        %300 = vmatprep.mubr.bf16.mxu0 0
        %301 = vmatmul.mubr.bf16.gmra.mxu0 %v259
        %v302 = vpop.f32.mrf.mxu0
        %v303 = vadd.f32 %v230, %v302
        %v304 = vpop.f32.mrf.mxu0
        %v305 = vpop.f32.mrf.mxu0
        %v306 = vadd.f32 %v235, %v305
        %v307 = vpop.f32.mrf.mxu0
        %308 = vmatprep.mubr.bf16.mxu0 0
        %309 = vmatmul.mubr.bf16.gmra.mxu0 %v262
        %v310 = vpop.f32.mrf.mxu0
        %v311 = vadd.f32 %v240, %v310
        %v312 = vpop.f32.mrf.mxu0
        %v313 = vpop.f32.mrf.mxu0
        %v314 = vadd.f32 %v245, %v313
        %v315 = vpop.f32.mrf.mxu0
        %316 = vdwg.mxu0
        %v317 = vmax.f32 %v303, 0.0
        %v318 = vmax.f32 %v306, 0.0
        %v319 = vmax.f32 %v311, 0.0
        %v320 = vmax.f32 %v314, 0.0
        %v321 = vld [vmem:[%s3] sm:$0xf]
        %v322 = vld [vmem:[%s3 + $0x4] sm:$0xf]
        %v323 = vpack.c.bf16 %v318, %v317
        %v324 = vpack.c.bf16 %v320, %v319
        %v327 = vunpack.c.l.b16 %v321
        %v328 = vunpack.c.l.b16 %v322
        %v329 = vpack.c.b16 %v328, %v327
        %vm330 = vcmask 261120
        %v332 = vsel %vm330, %v329, 0
        %334 = vmatprep.subr.bf16.mxu0 0
        %335 = vmatpush1.bf16.msra.mxu0 0
        %336 = vmatprep.subr.bf16.mxu0 0
        %337 = vmatpush1.bf16.msra.mxu0 0
        %338 = vmatprep.subr.bf16.mxu0 0
        %339 = vmatpush1.bf16.msra.mxu0 0
        %340 = vmatprep.subr.bf16.mxu0 0
        %341 = vmatpush1.bf16.msra.mxu0 0
        %342 = vmatprep.subr.bf16.mxu0 0
        %343 = vmatpush1.bf16.msra.mxu0 0
        %344 = vmatprep.subr.bf16.mxu0 0
        %345 = vmatpush1.bf16.msra.mxu0 0
        %346 = vmatprep.subr.bf16.mxu0 0
        %347 = vmatpush1.bf16.msra.mxu0 %v324
        %348 = vmatprep.subr.bf16.mxu0 0
        %349 = vmatpush1.bf16.msra.mxu0 %v323
        %350 = vmatprep.subr.bf16.mxu0 0
        %351 = vmatpush2.bf16.msra.mxu0 0
        %352 = vmatprep.subr.bf16.mxu0 0
        %353 = vmatpush2.bf16.msra.mxu0 0
        %354 = vmatprep.subr.bf16.mxu0 0
        %355 = vmatpush2.bf16.msra.mxu0 0
        %356 = vmatprep.subr.bf16.mxu0 0
        %357 = vmatpush2.bf16.msra.mxu0 0
        %358 = vmatprep.subr.bf16.mxu0 0
        %359 = vmatpush2.bf16.msra.mxu0 0
        %360 = vmatprep.subr.bf16.mxu0 0
        %361 = vmatpush2.bf16.msra.mxu0 0
        %362 = vmatprep.subr.bf16.mxu0 0
        %363 = vmatpush2.bf16.msra.mxu0 0
        %364 = vmatprep.subr.bf16.mxu0 0
        %365 = vmatpush2.bf16.msra.mxu0 0
        %366 = vmatprep.mubr.bf16.mxu0 0
        %367 = vmatmul.mubr.bf16.gmra.mxu0 %v332
        %v368 = vpop.f32.mrf.mxu0
        %v369 = vadd.f32 0.0, %v368
        %v370 = vpop.f32.mrf.mxu0
        %v371 = vpop.f32.mrf.mxu0
        %v372 = vadd.f32 0.0, %v371
        %v373 = vpop.f32.mrf.mxu0
        %374 = vdwg.mxu0
        %v375 = vpack.c.bf16 %v372, %v369
        %v377 = vunpack.c.l.b16 %v375
        %v378 = vunpack.c.h.b16 %v375
        %v379 = vpack.c.b16 %v377, %v377
        %v380 = vpack.c.b16 %v378, %v378
        %383 = vst [vmem:[%s208] sm:$0xf] %v379
        %384 = vst [vmem:[%s208 + $0x4] sm:$0xf] %v380
        %s385 = sand.u32 %s128, 1
        %s386 = sand.u32 %s128, 1
        %s387 = smul.addr %s386, 8
        %s388 = scalar_lea.vmem [#allocation2], %s387
        // Predicated region
        $region37: #{instance_segmentation_forward.1} parent=35 // pred_check
          %p389 = pneg %p138
        $region38: #{instance_segmentation_forward.1} parent=35 // pred_check_branch
          %391 = sbr.rel (%p389) target = $region40
        $region39: #{instance_segmentation_forward.1} parent=35 // pred_region
          %s392 = smul.addr %s19, 4
          %s393 = sadd.s32 %s20, %s392
          %s394 = smul.addr %s393, 4
          %s395 = scalar_lea.vmem %s4, %s394
          // Predicated region
          $region41: #{instance_segmentation_forward.1} parent=39 // pred_check
            _
          $region42: #{instance_segmentation_forward.1} parent=39 // pred_check_branch
            %397 = sbr.rel (0) target = $region44
          $region43: #{instance_segmentation_forward.1} parent=39 // pred_region
            // Predicated region
            $region45: #{instance_segmentation_forward.1} parent=43 // pred_check
              _
            $region46: #{instance_segmentation_forward.1} parent=43 // pred_check_branch
              %399 = sbr.rel target = $region48
            $region47: #{instance_segmentation_forward.1} parent=43 // pred_region
              // Predicated region
              $region60: #{instance_segmentation_forward.1} parent=47 // pred_check
                _
              $region61: #{instance_segmentation_forward.1} parent=47 // pred_check_branch
                %417 = sbr.rel (0) target = $region63
              $region62: #{instance_segmentation_forward.1} parent=47 // pred_region
                loop: start=0, step=1, limit=1
                $region64: #{instance_segmentation_forward.1} parent=62 // loop_pre_header
                  _
                $region65: #{instance_segmentation_forward.1} parent=62 // loop_header
                  %s419 = sphi 0, %s423
                  %p420 = scmp.ge.s32.totalorder %s419, 1
                  %s424 = sphi %s388, %s388
                  %s425 = sphi %s395, %s395
                $region66: #{instance_segmentation_forward.1} parent=62 // loop_header_branch
                  %422 = sbr.rel (%p420) target = $region70
                $region67: #{instance_segmentation_forward.1} parent=62 // loop_body
                  _
                $region68: #{instance_segmentation_forward.1} parent=62 // loop_footer
                  %s423 = sadd.s32 1, %s419
                $region69: #{instance_segmentation_forward.1} parent=62 // loop_footer_branch
                  %418 = sbr.rel target = $region65
                $region70: #{instance_segmentation_forward.1} parent=62 // loop_exit
                  _
                %s427 = ssub.s32 16, 1
                loop: start=0, step=1, limit=1
                $region71: #{instance_segmentation_forward.1} parent=62 // loop_pre_header
                  _
                $region72: #{instance_segmentation_forward.1} parent=62 // loop_header
                  %s429 = sphi 0, %s433
                  %p430 = scmp.ge.s32.totalorder %s429, 1
                  %s434 = sphi %s388, %s388
                  %s435 = sphi %s395, %s395
                $region73: #{instance_segmentation_forward.1} parent=62 // loop_header_branch
                  %432 = sbr.rel (%p430) target = $region77
                $region74: #{instance_segmentation_forward.1} parent=62 // loop_body
                  %v436 = vld [vmem:[%s434] sm:%s427]
                  %437 = vst [vmem:[%s435] sm:%s427] %v436
                  %v438 = vld [vmem:[%s434 + $0x4] sm:%s427]
                  %439 = vst [vmem:[%s435 + $0x8] sm:%s427] %v438
                $region75: #{instance_segmentation_forward.1} parent=62 // loop_footer
                  %s433 = sadd.s32 1, %s429
                $region76: #{instance_segmentation_forward.1} parent=62 // loop_footer_branch
                  %428 = sbr.rel target = $region72
                $region77: #{instance_segmentation_forward.1} parent=62 // loop_exit
                  _
              $region63: #{instance_segmentation_forward.1} parent=47 // pred_fallthru
                _
            $region48: #{instance_segmentation_forward.1} parent=43 // pred_fallthru
              _
            // Predicated region
            $region49: #{instance_segmentation_forward.1} parent=43 // pred_check
              _
            $region50: #{instance_segmentation_forward.1} parent=43 // pred_check_branch
              %401 = sbr.rel (0) target = $region52
            $region51: #{instance_segmentation_forward.1} parent=43 // pred_region
              %s403 = ssub.s32 16, 1
              loop: start=0, step=1, limit=1
              $region53: #{instance_segmentation_forward.1} parent=51 // loop_pre_header
                _
              $region54: #{instance_segmentation_forward.1} parent=51 // loop_header
                %s405 = sphi 0, %s409
                %p406 = scmp.ge.s32.totalorder %s405, 1
                %s410 = sphi %s388, %s388
                %s411 = sphi %s395, %s395
              $region55: #{instance_segmentation_forward.1} parent=51 // loop_header_branch
                %408 = sbr.rel (%p406) target = $region59
              $region56: #{instance_segmentation_forward.1} parent=51 // loop_body
                %v412 = vld [vmem:[%s410] sm:%s403]
                %413 = vst [vmem:[%s411] sm:%s403] %v412
                %v414 = vld [vmem:[%s410 + $0x4] sm:%s403]
                %415 = vst [vmem:[%s411 + $0x8] sm:%s403] %v414
              $region57: #{instance_segmentation_forward.1} parent=51 // loop_footer
                %s409 = sadd.s32 1, %s405
              $region58: #{instance_segmentation_forward.1} parent=51 // loop_footer_branch
                %404 = sbr.rel target = $region54
              $region59: #{instance_segmentation_forward.1} parent=51 // loop_exit
                _
            $region52: #{instance_segmentation_forward.1} parent=43 // pred_fallthru
              _
          $region44: #{instance_segmentation_forward.1} parent=39 // pred_fallthru
            _
          %440 = vnop
        $region40: #{instance_segmentation_forward.1} parent=35 // pred_fallthru
          _
      $region36: #{instance_segmentation_forward.1} parent=5 // pred_fallthru
        _
      %p441 = scmp.le.s32.totalorder 2, %s10
      // Predicated region
      $region78: #{instance_segmentation_forward.1} parent=5 // pred_check
        %p442 = pneg %p441
      $region79: #{instance_segmentation_forward.1} parent=5 // pred_check_branch
        %444 = sbr.rel (%p442) target = $region81
      $region80: #{instance_segmentation_forward.1} parent=5 // pred_region
        %s445 = ssub.s32 %s10, 2
        // Predicated region
        $region82: #{instance_segmentation_forward.1} parent=80 // pred_check
          %p446 = pneg %p144
        $region83: #{instance_segmentation_forward.1} parent=80 // pred_check_branch
          %448 = sbr.rel (%p446) target = $region85
        $region84: #{instance_segmentation_forward.1} parent=80 // pred_region
          %s449 = sand.u32 %s129, 1
          %s450 = sand.u32 %s129, 1
          %s451 = smul.addr %s450, 8
          %s452 = scalar_lea.vmem [#allocation2], %s451
        $region85: #{instance_segmentation_forward.1} parent=80 // pred_fallthru
          _
      $region81: #{instance_segmentation_forward.1} parent=5 // pred_fallthru
        _
    $region6: #{instance_segmentation_forward.1} parent=1 // loop_footer
      %s14 = sadd.s32 1, %s10
    $region7: #{instance_segmentation_forward.1} parent=1 // loop_footer_branch
      %9 = sbr.rel target = $region3
    $region8: #{instance_segmentation_forward.1} parent=1 // loop_exit
      _

</llo_original>
